<compile_context>
chip_gen: v6e
topology: v6e:2x2x1
jax: 0.10.0
libtpu: 0.0.40
codegen_flags: <defaults>
</compile_context>

<pallas_src>
import functools

import jax
import jax.numpy as jnp
from jax.experimental import pallas as pl
from jax.experimental.pallas import tpu as pltpu


# --------------------------------------------------------------------------
# Pallas kernel:
#   x_ref : (TR, k, Wo, k*C)  -- TR output-H rows of NHWC input, windows on axes 1/3
#   w_ref : (C, D)            -- fused / per-branch 1x1-conv weight (avg scale folded in)
#   b_ref : (1, D)
#   o_ref : (TR, Wo, D)
# --------------------------------------------------------------------------
def _psp_kernel(x_ref, w_ref, b_ref, o_ref, *, pool_is_max, rows_per_chunk):
    tr, k, wo, _ = x_ref.shape
    c = w_ref.shape[0]
    d = o_ref.shape[-1]
    w = w_ref[...]           # hoisted: loaded once per grid step
    b = b_ref[...]

    r0 = 0
    while r0 < tr:                                   # static (trace-time) chunk loop
        rows = min(rows_per_chunk, tr - r0)
        acc = None
        for dy in range(k):                          # incremental k*k window reduction:
            for dx in range(k):                      # only 2 (rows, Wo, C) slabs live
                slab = x_ref[r0:r0 + rows, dy, :, dx * c:(dx + 1) * c]
                if not pool_is_max:
                    slab = slab.astype(jnp.float32)  # avg: accumulate window sum in f32
                if acc is None:
                    acc = slab
                elif pool_is_max:
                    acc = jnp.maximum(acc, slab)
                else:
                    acc = acc + slab
        pooled = acc.reshape(rows * wo, c)           # (rows*Wo, C) for the MXU
        out = jnp.dot(pooled, w, preferred_element_type=jnp.float32) + b
        o_ref[r0:r0 + rows] = out.reshape(rows, wo, d).astype(o_ref.dtype)
        r0 += rows


# --------------------------------------------------------------------------
# Tiling heuristics (VMEM + vreg budgeted, grid >= 2 when possible)
# --------------------------------------------------------------------------
_VMEM_PIPELINE_BUDGET = 20 * 1024 * 1024   # double-buffered in+out blocks; safe on v5e/v6e/v7x
_POOLED_CHUNK_VREGS = 16                   # acc + slab ~= 2x this, out of 64 vregs
_MAX_CHUNKS_PER_BLOCK = 8


def _round_up(v, m):
    return (v + m - 1) // m * m


def _largest_divisor_leq(n, cap):
    cap = max(1, min(n, cap))
    for t in range(cap, 0, -1):
        if n % t == 0:
            return t
    return 1


def _pick_tiles(r, k, wo, c, d, itemsize):
    # vregs to hold one output row of the pooled tile ((8,128)-tile granularity)
    vregs_per_row = (_round_up(wo, 8) // 8) * (_round_up(c, 128) // 128)
    rc = max(1, _POOLED_CHUNK_VREGS // max(1, vregs_per_row))
    # VMEM bytes per output-H row for the (double-buffered) input + output blocks
    in_row = k * _round_up(wo, 8) * _round_up(k * c, 128) * itemsize
    out_row = _round_up(wo, 8) * _round_up(d, 128) * itemsize
    rows_vmem = max(1, _VMEM_PIPELINE_BUDGET // (2 * (in_row + out_row)))
    tr_cap = min(r, rows_vmem, _MAX_CHUNKS_PER_BLOCK * rc)
    tr = _largest_divisor_leq(r, tr_cap)
    if tr == r and r > 1:
        # keep grid >= 2 so pipelining works and v7x can shard the parallel axis
        tr = _largest_divisor_leq(r, min(r // 2, tr_cap))
    return tr, min(rc, tr)


# --------------------------------------------------------------------------
# One pooled+projected branch (or the fused all-branches call)
# --------------------------------------------------------------------------
def _pool_conv_pallas(x_r, w, b, *, k, wo, pool_is_max, out_dtype, tr, rc):
    r = x_r.shape[0]
    c = w.shape[0]
    d = w.shape[1]
    kernel = functools.partial(_psp_kernel, pool_is_max=pool_is_max, rows_per_chunk=rc)
    return pl.pallas_call(
        kernel,
        out_shape=jax.ShapeDtypeStruct((r, wo, d), out_dtype),
        grid_spec=pltpu.PrefetchScalarGridSpec(
            num_scalar_prefetch=0,
            grid=(r // tr,),
            in_specs=[
                pl.BlockSpec((tr, k, wo, k * c), lambda i: (i, 0, 0, 0)),
                pl.BlockSpec((c, d), lambda i: (0, 0)),
                pl.BlockSpec((1, d), lambda i: (0, 0)),
            ],
            out_specs=pl.BlockSpec((tr, wo, d), lambda i: (i, 0, 0)),
        ),
        compiler_params=pltpu.CompilerParams(
            dimension_semantics=("parallel",),
            vmem_limit_bytes=32 * 1024 * 1024,
        ),
    )(x_r, w, b)


def _psp_branch(x_nchw, w, b, k, pool_is_max, out_dtype):
    n, c, h, wdim = x_nchw.shape
    ho, wo = h // k, wdim // k
    assert ho > 0 and wo > 0, "pooling kernel larger than spatial dims"
    xc = x_nchw[:, :, : ho * k, : wo * k]
    x_nhwc = jnp.transpose(xc, (0, 2, 3, 1))            # the only real data rearrangement
    x_r = x_nhwc.reshape(n * ho, k, wo, k * c)          # free reshape; windows on non-tiled axes
    d = w.shape[1]
    tr, rc = _pick_tiles(n * ho, k, wo, c, d, x_nchw.dtype.itemsize)
    y = _pool_conv_pallas(x_r, w, b, k=k, wo=wo, pool_is_max=pool_is_max,
                          out_dtype=out_dtype, tr=tr, rc=rc)   # (N*Ho, Wo, D)
    y = y.reshape(n, ho, wo, d)
    return jnp.transpose(y, (0, 3, 1, 2))               # NCHW


# --------------------------------------------------------------------------
# Module wrapper mirroring PSP_2D(in_channel, kernels, pool_type)
# --------------------------------------------------------------------------
class PSP2DPallas:
    def __init__(self, in_channel, kernels=(1, 2, 3, 6), pool_type="max", key=None):
        assert pool_type in ("max", "avg")
        assert in_channel % len(kernels) == 0
        self.kernels = tuple(int(k) for k in kernels)
        self.pool_type = pool_type
        self.in_channel = in_channel
        cout = in_channel // len(kernels)
        if key is None:
            key = jax.random.PRNGKey(0)

        self.params = []        # logical (unscaled) params, used by the reference
        ws, bs = [], []
        bound = 1.0 / float(in_channel) ** 0.5
        for k in self.kernels:
            key, kw, kb = jax.random.split(key, 3)
            wmat = jax.random.uniform(kw, (cout, in_channel), jnp.float32, -bound, bound)
            bvec = jax.random.uniform(kb, (cout,), jnp.float32, -bound, bound)
            self.params.append((wmat.T, bvec))
            scale = 1.0 if pool_type == "max" else 1.0 / float(k * k)
            ws.append(wmat.T * scale)                  # fold avg 1/(k*k) into the weight (init-time)
            bs.append(bvec)

        self._branch_w = ws
        self._branch_b = [bv.reshape(1, -1) for bv in bs]
        self._all_equal = len(set(self.kernels)) == 1
        if self._all_equal:
            # fuse all branches: one (C, in_channel) weight, one bias, one kernel launch
            self._w_fused = jnp.concatenate(ws, axis=1)
            self._b_fused = jnp.concatenate(bs).reshape(1, -1)

    def __call__(self, x_nchw):
        pool_is_max = self.pool_type == "max"
        if self._all_equal:
            return _psp_branch(x_nchw, self._w_fused, self._b_fused, self.kernels[0],
                               pool_is_max, x_nchw.dtype)
        # TODO(synk): non-equal kernels (the PyTorch default [1,2,3,6]) give mismatched
        # pooled spatial sizes, so this concat fails exactly as it does in PyTorch.
        outs = [
            _psp_branch(x_nchw, w, b, k, pool_is_max, x_nchw.dtype)
            for k, w, b in zip(self.kernels, self._branch_w, self._branch_b)
        ]
        return jnp.concatenate(outs, axis=1)


# --------------------------------------------------------------------------
# Pure-JAX reference for validation
# --------------------------------------------------------------------------
def _psp_ref(x, kernels, params, pool_type):
    outs = []
    for k, (w_t, b) in zip(kernels, params):
        n, c, h, w = x.shape
        ho, wo = h // k, w // k
        xc = x[:, :, : ho * k, : wo * k].reshape(n, c, ho, k, wo, k)
        pooled = xc.max(axis=(3, 5)) if pool_type == "max" else xc.mean(axis=(3, 5))
        y = jnp.einsum("nchw,cd->ndhw", pooled, w_t) + b.reshape(1, -1, 1, 1)
        outs.append(y)
    return jnp.concatenate(outs, axis=1)


if __name__ == "__main__":
    key = jax.random.PRNGKey(0)
    kx, kp = jax.random.split(key)

    in_channel = 8
    kernels = (2, 2, 2, 2)  # equal kernels: the only concat-valid configuration (see TODO above)
    x = jax.random.normal(kx, (2, in_channel, 16, 16), jnp.float32)

    model = PSP2DPallas(in_channel, kernels=kernels, pool_type="max", key=kp)
    out = jax.block_until_ready(jax.jit(lambda inp: model(inp))(x))
    ref = _psp_ref(x, kernels, model.params, "max")
    assert out.shape == (2, in_channel, 8, 8), out.shape
    assert jnp.allclose(out, ref, atol=1e-5, rtol=1e-5), "max-pool mismatch vs reference"

    model_avg = PSP2DPallas(in_channel, kernels=kernels, pool_type="avg", key=kp)
    out_avg = jax.block_until_ready(jax.jit(lambda inp: model_avg(inp))(x))
    ref_avg = _psp_ref(x, kernels, model_avg.params, "avg")
    assert jnp.allclose(out_avg, ref_avg, atol=1e-5, rtol=1e-5), "avg-pool mismatch vs reference"

    print("KERNEL_OK")
</pallas_src>

<mosaic_0001>
module attributes {stable_mosaic.version = 11 : i64} {
  func.func @_psp_kernel(%arg0: i32, %arg1: memref<8x2x8x16xf32, #tpu.memory_space<vmem>>, %arg2: memref<8x8xf32, #tpu.memory_space<vmem>>, %arg3: memref<1x8xf32, #tpu.memory_space<vmem>>, %arg4: memref<8x8x8xf32, #tpu.memory_space<vmem>>) attributes {dimension_semantics = [#tpu.dimension_semantics<parallel>], iteration_bounds = array<i64: 2>, scalar_prefetch = 0 : i64, scratch_operands = 0 : i64, tpu.core_type = #tpu.core_type<tc>, window_params = [{transform_indices = @transform_0, window_bounds = array<i64: 8, 2, 8, 16>}, {pipeline_mode = #tpu.pipeline_mode<synchronous>, transform_indices = @transform_1, window_bounds = array<i64: 8, 8>}, {pipeline_mode = #tpu.pipeline_mode<synchronous>, transform_indices = @transform_2, window_bounds = array<i64: 1, 8>}, {transform_indices = @transform_3, window_bounds = array<i64: 8, 8, 8>}]} {
    %c0 = arith.constant 0 : index
    %c0_0 = arith.constant 0 : index
    %0 = vector.load %arg2[%c0, %c0_0] : memref<8x8xf32, #tpu.memory_space<vmem>>, vector<8x8xf32>
    %c0_1 = arith.constant 0 : index
    %c0_2 = arith.constant 0 : index
    %1 = vector.load %arg3[%c0_1, %c0_2] : memref<1x8xf32, #tpu.memory_space<vmem>>, vector<1x8xf32>
    %c0_3 = arith.constant 0 : index
    %c0_4 = arith.constant 0 : index
    %c0_5 = arith.constant 0 : index
    %c0_6 = arith.constant 0 : index
    %2 = vector.load %arg1[%c0_3, %c0_4, %c0_5, %c0_6] : memref<8x2x8x16xf32, #tpu.memory_space<vmem>>, vector<8x1x8x8xf32>
    %3 = vector.shape_cast %2 : vector<8x1x8x8xf32> to vector<8x8x8xf32>
    %c0_7 = arith.constant 0 : index
    %c0_8 = arith.constant 0 : index
    %c0_9 = arith.constant 0 : index
    %c8 = arith.constant 8 : index
    %4 = vector.load %arg1[%c0_7, %c0_8, %c0_9, %c8] : memref<8x2x8x16xf32, #tpu.memory_space<vmem>>, vector<8x1x8x8xf32>
    %5 = vector.shape_cast %4 : vector<8x1x8x8xf32> to vector<8x8x8xf32>
    %6 = arith.maximumf %3, %5 : vector<8x8x8xf32>
    %c0_10 = arith.constant 0 : index
    %c1 = arith.constant 1 : index
    %c0_11 = arith.constant 0 : index
    %c0_12 = arith.constant 0 : index
    %7 = vector.load %arg1[%c0_10, %c1, %c0_11, %c0_12] : memref<8x2x8x16xf32, #tpu.memory_space<vmem>>, vector<8x1x8x8xf32>
    %8 = vector.shape_cast %7 : vector<8x1x8x8xf32> to vector<8x8x8xf32>
    %9 = arith.maximumf %6, %8 : vector<8x8x8xf32>
    %c0_13 = arith.constant 0 : index
    %c1_14 = arith.constant 1 : index
    %c0_15 = arith.constant 0 : index
    %c8_16 = arith.constant 8 : index
    %10 = vector.load %arg1[%c0_13, %c1_14, %c0_15, %c8_16] : memref<8x2x8x16xf32, #tpu.memory_space<vmem>>, vector<8x1x8x8xf32>
    %11 = vector.shape_cast %10 : vector<8x1x8x8xf32> to vector<8x8x8xf32>
    %12 = arith.maximumf %9, %11 : vector<8x8x8xf32>
    %13 = vector.shape_cast %12 : vector<8x8x8xf32> to vector<64x8xf32>
    %cst = arith.constant dense<0.000000e+00> : vector<64x8xf32>
    %14 = tpu.matmul %13, %0, %cst {dimension_numbers = #tpu.dot_dimension_numbers<[1], [0], [0], [1], [0, 0, 1, 1], [], []>} : vector<64x8xf32>, vector<8x8xf32>, vector<64x8xf32> -> vector<64x8xf32>
    %15 = vector.broadcast %1 : vector<1x8xf32> to vector<64x8xf32>
    %16 = arith.addf %14, %15 : vector<64x8xf32>
    %17 = vector.shape_cast %16 : vector<64x8xf32> to vector<8x8x8xf32>
    %c0_17 = arith.constant 0 : index
    %c0_18 = arith.constant 0 : index
    %c0_19 = arith.constant 0 : index
    %18 = vector.load %arg4[%c0_17, %c0_18, %c0_19] : memref<8x8x8xf32, #tpu.memory_space<vmem>>, vector<8x8x8xf32>
    tpu.vector_store %arg4[%c0_17, %c0_18, %c0_19], %17 {strides = array<i32>} : memref<8x8x8xf32, #tpu.memory_space<vmem>>, vector<8x8x8xf32>,
    return
  }
  func.func @transform_0(%arg0: i32) -> (i32, i32, i32, i32) {
    %c0_i32 = arith.constant 0 : i32
    %c0_i32_0 = arith.constant 0 : i32
    %c0_i32_1 = arith.constant 0 : i32
    %c0_i32_2 = arith.constant 0 : i32
    return %arg0, %c0_i32, %c0_i32_0, %c0_i32_1 : i32, i32, i32, i32
  }
  func.func @transform_1(%arg0: i32) -> (i32, i32) {
    %c0_i32 = arith.constant 0 : i32
    %c0_i32_0 = arith.constant 0 : i32
    %c0_i32_1 = arith.constant 0 : i32
    return %c0_i32, %c0_i32_0 : i32, i32
  }
  func.func @transform_2(%arg0: i32) -> (i32, i32) {
    %c0_i32 = arith.constant 0 : i32
    %c0_i32_0 = arith.constant 0 : i32
    %c0_i32_1 = arith.constant 0 : i32
    return %c0_i32, %c0_i32_0 : i32, i32
  }
  func.func @transform_3(%arg0: i32) -> (i32, i32, i32) {
    %c0_i32 = arith.constant 0 : i32
    %c0_i32_0 = arith.constant 0 : i32
    %c0_i32_1 = arith.constant 0 : i32
    return %arg0, %c0_i32, %c0_i32_0 : i32, i32, i32
  }
}

</mosaic_0001>

<llo_original>
// kernel: _lambda_.1
$region0: #{_lambda_.1}
  #allocation0 [shape = 'u32[]', space=smem, size = 0x4, offset = 0x4, fixed_abs, tag = 'smem constant byte address 0x4 - core index']
  #allocation1 [shape = 'u32[144,128]{1,0:T(1,128)}', space=vmem, size = 0x12000, scoped, tag = 'internal scratch']
  %s0 = inlined_call_operand.vmem [shape: f32[16,2,8,16], index: 0, kind: input, shape index: {}]
  %s1 = inlined_call_operand.vmem [shape: f32[8,8], index: 1, kind: input, shape index: {}]
  %s2 = inlined_call_operand.vmem [shape: f32[1,8], index: 2, kind: input, shape index: {}]
  %s3 = inlined_call_operand.vmem [shape: f32[16,8,8], index: 3, kind: output, shape index: {}]
  %s4 = sld [smem:[#allocation0]]
  $region45: #{_lambda_.1} parent=0
    _
  %s6 = ssub.s32 1, %s4
  %s7 = scalar_select 0, %s6, %s4
  loop: start=0, step=1, limit=4
  $region2: #{_lambda_.1} parent=0 // loop_pre_header
    _
  $region3: #{_lambda_.1} parent=0 // loop_header
    %s9 = sphi 0, %s13
    %p10 = scmp.ge.s32.totalorder %s9, 4
    %s19 = sphi 0, %s21
    %s22 = sphi 0, %s19
    %s23 = sphi 0, %s22
    %s39 = sphi 0, %s23
    %s43 = sphi 0, %s43
    %s45 = sphi 0, %s43
    %s46 = sphi 0, %s45
    %s60 = sphi 0, %s46
    %s64 = sphi 0, %s64
    %s66 = sphi 0, %s64
    %s67 = sphi 0, %s66
    %s81 = sphi 0, %s67
    %s87 = sphi 0, %s89
    %s90 = sphi 0, %s87
    %s91 = sphi 0, %s90
    %s107 = sphi 0, %s91
  $region4: #{_lambda_.1} parent=0 // loop_header_branch
    %12 = sbr.rel (%p10) target = $region8
  $region5: #{_lambda_.1} parent=0 // loop_body
    %s14 = ssub.s32 %s9, 1
    %s15 = ssub.s32 %s9, 2
    %s16 = sadd.s32 %s9, 1
    %s17 = ssub.s32 %s9, %s16
    %p18 = scmp.eq.s32.totalorder %s17, 0
    %s20 = sadd.s32 %s19, 1
    %s21 = scalar_select %p18, %s19, %s20
    %p24 = pneg %p18
    %p25 = scmp.eq.s32.totalorder %s9, 1
    %p26 = por %p24, %p25
    %p27 = scmp.ne.s32.totalorder %s19, %s22
    %p28 = scmp.eq.s32.totalorder %s9, 0
    %p29 = por %p27, %p28
    %p30 = scmp.ne.s32.totalorder %s19, %s22
    %p31 = scmp.eq.s32.totalorder %s14, 1
    %p32 = por %p30, %p31
    %p33 = scmp.ne.s32.totalorder %s22, %s23
    %p34 = scmp.eq.s32.totalorder %s14, 0
    %p35 = por %p33, %p34
    %p36 = scmp.ne.s32.totalorder %s22, %s23
    %p37 = scmp.eq.s32.totalorder %s15, 1
    %p38 = por %p36, %p37
    %p40 = scmp.ne.s32.totalorder %s23, %s39
    %p41 = scmp.eq.s32.totalorder %s15, 0
    %p42 = por %p40, %p41
    %s44 = sadd.s32 %s43, 1
    %p47 = scmp.eq.s32.totalorder %s9, 1
    %p48 = scmp.ne.s32.totalorder %s43, %s45
    %p49 = scmp.eq.s32.totalorder %s9, 0
    %p50 = por %p48, %p49
    %p51 = scmp.ne.s32.totalorder %s43, %s45
    %p52 = scmp.eq.s32.totalorder %s14, 1
    %p53 = por %p51, %p52
    %p54 = scmp.ne.s32.totalorder %s45, %s46
    %p55 = scmp.eq.s32.totalorder %s14, 0
    %p56 = por %p54, %p55
    %p57 = scmp.ne.s32.totalorder %s45, %s46
    %p58 = scmp.eq.s32.totalorder %s15, 1
    %p59 = por %p57, %p58
    %p61 = scmp.ne.s32.totalorder %s46, %s60
    %p62 = scmp.eq.s32.totalorder %s15, 0
    %p63 = por %p61, %p62
    %s65 = sadd.s32 %s64, 1
    %p68 = scmp.eq.s32.totalorder %s9, 1
    %p69 = scmp.ne.s32.totalorder %s64, %s66
    %p70 = scmp.eq.s32.totalorder %s9, 0
    %p71 = por %p69, %p70
    %p72 = scmp.ne.s32.totalorder %s64, %s66
    %p73 = scmp.eq.s32.totalorder %s14, 1
    %p74 = por %p72, %p73
    %p75 = scmp.ne.s32.totalorder %s66, %s67
    %p76 = scmp.eq.s32.totalorder %s14, 0
    %p77 = por %p75, %p76
    %p78 = scmp.ne.s32.totalorder %s66, %s67
    %p79 = scmp.eq.s32.totalorder %s15, 1
    %p80 = por %p78, %p79
    %p82 = scmp.ne.s32.totalorder %s67, %s81
    %p83 = scmp.eq.s32.totalorder %s15, 0
    %p84 = por %p82, %p83
    %s85 = ssub.s32 %s9, %s16
    %p86 = scmp.eq.s32.totalorder %s85, 0
    %s88 = sadd.s32 %s87, 1
    %s89 = scalar_select %p86, %s87, %s88
    %p92 = pneg %p86
    %p93 = scmp.eq.s32.totalorder %s9, 1
    %p94 = por %p92, %p93
    %p95 = scmp.ne.s32.totalorder %s87, %s90
    %p96 = scmp.eq.s32.totalorder %s9, 0
    %p97 = por %p95, %p96
    %p98 = scmp.ne.s32.totalorder %s87, %s90
    %p99 = scmp.eq.s32.totalorder %s14, 1
    %p100 = por %p98, %p99
    %p101 = scmp.ne.s32.totalorder %s90, %s91
    %p102 = scmp.eq.s32.totalorder %s14, 0
    %p103 = por %p101, %p102
    %p104 = scmp.ne.s32.totalorder %s90, %s91
    %p105 = scmp.eq.s32.totalorder %s15, 1
    %p106 = por %p104, %p105
    %p108 = scmp.ne.s32.totalorder %s91, %s107
    %p109 = scmp.eq.s32.totalorder %s15, 0
    %p110 = por %p108, %p109
    %p111 = scmp.le.s32.totalorder 1, %s9
    %p112 = scmp.lt.s32.totalorder %s9, 3
    %p113 = pnand %p111, %p112
    %p114 = pneg %p113
    // Predicated region
    $region9: #{_lambda_.1} parent=5 // pred_check
      _
    $region10: #{_lambda_.1} parent=5 // pred_check_branch
      %116 = sbr.rel (%p113) target = $region12
    $region11: #{_lambda_.1} parent=5 // pred_region
      %s117 = ssub.s32 %s9, 1
      // Predicated region
      $region13: #{_lambda_.1} parent=11 // pred_check
        %p118 = pneg %p56
      $region14: #{_lambda_.1} parent=11 // pred_check_branch
        %120 = sbr.rel (%p118) target = $region16
      $region15: #{_lambda_.1} parent=11 // pred_region
        _
      $region16: #{_lambda_.1} parent=11 // pred_fallthru
        _
      // Predicated region
      $region17: #{_lambda_.1} parent=11 // pred_check
        %p121 = pneg %p77
      $region18: #{_lambda_.1} parent=11 // pred_check_branch
        %123 = sbr.rel (%p121) target = $region20
      $region19: #{_lambda_.1} parent=11 // pred_region
        _
      $region20: #{_lambda_.1} parent=11 // pred_fallthru
        _
    $region12: #{_lambda_.1} parent=5 // pred_fallthru
      _
    %p124 = scmp.lt.s32.totalorder %s9, 2
    // Predicated region
    $region21: #{_lambda_.1} parent=5 // pred_check
      %p125 = pneg %p124
    $region22: #{_lambda_.1} parent=5 // pred_check_branch
      %127 = sbr.rel (%p125) target = $region24
    $region23: #{_lambda_.1} parent=5 // pred_region
      // Predicated region
      $region25: #{_lambda_.1} parent=23 // pred_check
        %p128 = pneg %p29
      $region26: #{_lambda_.1} parent=23 // pred_check_branch
        %130 = sbr.rel (%p128) target = $region28
      $region27: #{_lambda_.1} parent=23 // pred_region
        %s131 = smul.u32 8, %s9
        %p132 = scmp.lt.s32.totalorder %s131, 15
        %s133 = scalar_select %p132, %s131, 15
        %s134 = smul.addr %s133, 2
        %s135 = smul.addr %s134, 8
        %s136 = scalar_lea.vmem %s0, %s135
        %s137 = smul.u32 8, %s9
      $region28: #{_lambda_.1} parent=23 // pred_fallthru
        _
    $region24: #{_lambda_.1} parent=5 // pred_fallthru
      _
    %p138 = scmp.le.s32.totalorder 1, %s9
    %p139 = scmp.lt.s32.totalorder %s9, 3
    %p140 = pnand %p138, %p139
    %p141 = pneg %p140
    // Predicated region
    $region29: #{_lambda_.1} parent=5 // pred_check
      _
    $region30: #{_lambda_.1} parent=5 // pred_check_branch
      %143 = sbr.rel (%p140) target = $region32
    $region31: #{_lambda_.1} parent=5 // pred_region
      %s144 = ssub.s32 %s9, 1
      %s145 = smul.u32 8, %s14
      %p146 = scmp.lt.s32.totalorder %s145, 15
      %s147 = scalar_select %p146, %s145, 15
      %s148 = smul.addr %s147, 2
      %s149 = smul.addr %s148, 8
      %s150 = scalar_lea.vmem %s0, %s149
      %p151 = pneg %p35
      %p152 = pneg %p32
      %p153 = pneg %p56
      %p154 = pneg %p53
      %p155 = pneg %p77
      %p156 = pneg %p74
      %p157 = pneg %p103
      %p158 = pneg %p100
      %s159 = smul.u32 8, %s14
      %p160 = scmp.lt.s32.totalorder %s159, 15
      %s161 = scalar_select %p160, %s159, 15
      %s162 = smul.addr %s161, 8
      %s163 = scalar_lea.vmem %s3, %s162
      %s164 = smul.u32 8, %s14
      %p165 = scmp.lt.s32.totalorder %s164, 15
      %s166 = scalar_select %p165, %s164, 15
      %s167 = smul.addr %s166, 2
      %s168 = smul.addr %s167, 8
      %s169 = scalar_lea.vmem %s0, %s168
      %s170 = smul.u32 8, %s14
      %s171 = smul.u32 8, %s14
      %p172 = scmp.lt.s32.totalorder %s171, 15
      %s173 = scalar_select %p172, %s171, 15
      %s174 = smul.addr %s173, 8
      %s175 = scalar_lea.vmem %s3, %s174
      %s176 = smul.u32 8, %s14
      %v177 = vld [vmem:[%s1] sm:$0xff]
      %v178 = vld [vmem:[%s2] sm:$0x1]
      %v179 = vld [vmem:[%s169] sm:$0xff]
      %v180 = vld [vmem:[%s169 + $0x10] sm:$0xff]
      %v181 = vld [vmem:[%s169 + $0x20] sm:$0xff]
      %v182 = vld [vmem:[%s169 + $0x30] sm:$0xff]
      %v183 = vld [vmem:[%s169 + $0x40] sm:$0xff]
      %v184 = vld [vmem:[%s169 + $0x50] sm:$0xff]
      %v185 = vld [vmem:[%s169 + $0x60] sm:$0xff]
      %v186 = vld [vmem:[%s169 + $0x70] sm:$0xff]
      %195 = vrot.lane.b32.xlu0 %v179, 120
      %v196 = vpop.permute.xlu0 %195
      %197 = vrot.lane.b32.xlu0 %v180, 120
      %v198 = vpop.permute.xlu0 %197
      %199 = vrot.lane.b32.xlu0 %v181, 120
      %v200 = vpop.permute.xlu0 %199
      %201 = vrot.lane.b32.xlu0 %v182, 120
      %v202 = vpop.permute.xlu0 %201
      %203 = vrot.lane.b32.xlu0 %v183, 120
      %v204 = vpop.permute.xlu0 %203
      %205 = vrot.lane.b32.xlu0 %v184, 120
      %v206 = vpop.permute.xlu0 %205
      %207 = vrot.lane.b32.xlu0 %v185, 120
      %v208 = vpop.permute.xlu0 %207
      %209 = vrot.lane.b32.xlu0 %v186, 120
      %v210 = vpop.permute.xlu0 %209
      %v219 = vmax.f32 %v179, %v196
      %v220 = vmax.f32 %v180, %v198
      %v221 = vmax.f32 %v181, %v200
      %v222 = vmax.f32 %v182, %v202
      %v223 = vmax.f32 %v183, %v204
      %v224 = vmax.f32 %v184, %v206
      %v225 = vmax.f32 %v185, %v208
      %v226 = vmax.f32 %v186, %v210
      %s227 = scalar_lea.vmem %s169, 8
      %v228 = vld [vmem:[%s227] sm:$0xff]
      %v229 = vld [vmem:[%s227 + $0x10] sm:$0xff]
      %v230 = vld [vmem:[%s227 + $0x20] sm:$0xff]
      %v231 = vld [vmem:[%s227 + $0x30] sm:$0xff]
      %v232 = vld [vmem:[%s227 + $0x40] sm:$0xff]
      %v233 = vld [vmem:[%s227 + $0x50] sm:$0xff]
      %v234 = vld [vmem:[%s227 + $0x60] sm:$0xff]
      %v235 = vld [vmem:[%s227 + $0x70] sm:$0xff]
      %v236 = vmax.f32 %v219, %v228
      %v237 = vmax.f32 %v220, %v229
      %v238 = vmax.f32 %v221, %v230
      %v239 = vmax.f32 %v222, %v231
      %v240 = vmax.f32 %v223, %v232
      %v241 = vmax.f32 %v224, %v233
      %v242 = vmax.f32 %v225, %v234
      %v243 = vmax.f32 %v226, %v235
      %252 = vrot.lane.b32.xlu0 %v228, 120
      %v253 = vpop.permute.xlu0 %252
      %254 = vrot.lane.b32.xlu0 %v229, 120
      %v255 = vpop.permute.xlu0 %254
      %256 = vrot.lane.b32.xlu0 %v230, 120
      %v257 = vpop.permute.xlu0 %256
      %258 = vrot.lane.b32.xlu0 %v231, 120
      %v259 = vpop.permute.xlu0 %258
      %260 = vrot.lane.b32.xlu0 %v232, 120
      %v261 = vpop.permute.xlu0 %260
      %262 = vrot.lane.b32.xlu0 %v233, 120
      %v263 = vpop.permute.xlu0 %262
      %264 = vrot.lane.b32.xlu0 %v234, 120
      %v265 = vpop.permute.xlu0 %264
      %266 = vrot.lane.b32.xlu0 %v235, 120
      %v267 = vpop.permute.xlu0 %266
      %v276 = vmax.f32 %v236, %v253
      %v277 = vmax.f32 %v237, %v255
      %v278 = vmax.f32 %v238, %v257
      %v279 = vmax.f32 %v239, %v259
      %v280 = vmax.f32 %v240, %v261
      %v281 = vmax.f32 %v241, %v263
      %v282 = vmax.f32 %v242, %v265
      %v283 = vmax.f32 %v243, %v267
      %v285 = vlaneseq
      %v286 = vshrl.u32 %v285, 7
      %v287 = vsub.s32 0, %v286
      %v288 = vrot.slane %v178, %v287
      %vm290 = vcmask 64512
      %v292 = vsel %vm290, %v276, 0
      %v295 = vsel %vm290, %v277, 0
      %v298 = vsel %vm290, %v278, 0
      %v301 = vsel %vm290, %v279, 0
      %v304 = vsel %vm290, %v280, 0
      %v307 = vsel %vm290, %v281, 0
      %v310 = vsel %vm290, %v282, 0
      %v313 = vsel %vm290, %v283, 0
      %315 = vmatprep.subr.mxu0 0.0
      %316 = vmatpush1.msra.mxu0 0.0
      %317 = vmatprep.subr.mxu0 0.0
      %318 = vmatpush1.msra.mxu0 0.0
      %319 = vmatprep.subr.mxu0 0.0
      %320 = vmatpush1.msra.mxu0 0.0
      %321 = vmatprep.subr.mxu0 0.0
      %322 = vmatpush1.msra.mxu0 0.0
      %323 = vmatprep.subr.mxu0 0.0
      %324 = vmatpush1.msra.mxu0 0.0
      %325 = vmatprep.subr.mxu0 0.0
      %326 = vmatpush1.msra.mxu0 0.0
      %327 = vmatprep.subr.mxu0 0.0
      %328 = vmatpush1.msra.mxu0 0.0
      %329 = vmatprep.subr.mxu0 0.0
      %330 = vmatpush1.msra.mxu0 0.0
      %331 = vmatprep.subr.mxu0 0.0
      %332 = vmatpush1.msra.mxu0 0.0
      %333 = vmatprep.subr.mxu0 0.0
      %334 = vmatpush1.msra.mxu0 0.0
      %335 = vmatprep.subr.mxu0 0.0
      %336 = vmatpush1.msra.mxu0 0.0
      %337 = vmatprep.subr.mxu0 0.0
      %338 = vmatpush1.msra.mxu0 0.0
      %339 = vmatprep.subr.mxu0 0.0
      %340 = vmatpush1.msra.mxu0 0.0
      %341 = vmatprep.subr.mxu0 0.0
      %342 = vmatpush1.msra.mxu0 0.0
      %343 = vmatprep.subr.mxu0 0.0
      %344 = vmatpush1.msra.mxu0 0.0
      %345 = vmatprep.subr.mxu0 0.0
      %346 = vmatpush1.msra.mxu0 %v177
      %347 = vmatprep.subr.mxu0 0.0
      %348 = vmatpush2.msra.mxu0 0.0
      %349 = vmatprep.subr.mxu0 0.0
      %350 = vmatpush2.msra.mxu0 0.0
      %351 = vmatprep.subr.mxu0 0.0
      %352 = vmatpush2.msra.mxu0 0.0
      %353 = vmatprep.subr.mxu0 0.0
      %354 = vmatpush2.msra.mxu0 0.0
      %355 = vmatprep.subr.mxu0 0.0
      %356 = vmatpush2.msra.mxu0 0.0
      %357 = vmatprep.subr.mxu0 0.0
      %358 = vmatpush2.msra.mxu0 0.0
      %359 = vmatprep.subr.mxu0 0.0
      %360 = vmatpush2.msra.mxu0 0.0
      %361 = vmatprep.subr.mxu0 0.0
      %362 = vmatpush2.msra.mxu0 0.0
      %363 = vmatprep.subr.mxu0 0.0
      %364 = vmatpush2.msra.mxu0 0.0
      %365 = vmatprep.subr.mxu0 0.0
      %366 = vmatpush2.msra.mxu0 0.0
      %367 = vmatprep.subr.mxu0 0.0
      %368 = vmatpush2.msra.mxu0 0.0
      %369 = vmatprep.subr.mxu0 0.0
      %370 = vmatpush2.msra.mxu0 0.0
      %371 = vmatprep.subr.mxu0 0.0
      %372 = vmatpush2.msra.mxu0 0.0
      %373 = vmatprep.subr.mxu0 0.0
      %374 = vmatpush2.msra.mxu0 0.0
      %375 = vmatprep.subr.mxu0 0.0
      %376 = vmatpush2.msra.mxu0 0.0
      %377 = vmatprep.subr.mxu0 0.0
      %378 = vmatpush2.msra.mxu0 0.0
      %379 = vmatprep.mubr.f32.mxu0 0.0
      %380 = vmatmul.mubr.f32.gmra.mxu0 %v292
      %v381 = vpop.f32.mrf.mxu0
      %v382 = vadd.f32 %v288, %v381
      %v383 = vpop.f32.mrf.mxu0
      %384 = vmatprep.mubr.f32.mxu0 0.0
      %385 = vmatmul.mubr.f32.gmra.mxu0 %v295
      %v386 = vpop.f32.mrf.mxu0
      %v387 = vadd.f32 %v288, %v386
      %v388 = vpop.f32.mrf.mxu0
      %389 = vmatprep.mubr.f32.mxu0 0.0
      %390 = vmatmul.mubr.f32.gmra.mxu0 %v298
      %v391 = vpop.f32.mrf.mxu0
      %v392 = vadd.f32 %v288, %v391
      %v393 = vpop.f32.mrf.mxu0
      %394 = vmatprep.mubr.f32.mxu0 0.0
      %395 = vmatmul.mubr.f32.gmra.mxu0 %v301
      %v396 = vpop.f32.mrf.mxu0
      %v397 = vadd.f32 %v288, %v396
      %v398 = vpop.f32.mrf.mxu0
      %399 = vmatprep.mubr.f32.mxu0 0.0
      %400 = vmatmul.mubr.f32.gmra.mxu0 %v304
      %v401 = vpop.f32.mrf.mxu0
      %v402 = vadd.f32 %v288, %v401
      %v403 = vpop.f32.mrf.mxu0
      %404 = vmatprep.mubr.f32.mxu0 0.0
      %405 = vmatmul.mubr.f32.gmra.mxu0 %v307
      %v406 = vpop.f32.mrf.mxu0
      %v407 = vadd.f32 %v288, %v406
      %v408 = vpop.f32.mrf.mxu0
      %409 = vmatprep.mubr.f32.mxu0 0.0
      %410 = vmatmul.mubr.f32.gmra.mxu0 %v310
      %v411 = vpop.f32.mrf.mxu0
      %v412 = vadd.f32 %v288, %v411
      %v413 = vpop.f32.mrf.mxu0
      %414 = vmatprep.mubr.f32.mxu0 0.0
      %415 = vmatmul.mubr.f32.gmra.mxu0 %v313
      %v416 = vpop.f32.mrf.mxu0
      %v417 = vadd.f32 %v288, %v416
      %v418 = vpop.f32.mrf.mxu0
      %419 = vdwg.mxu0
      %420 = vst.msk [vmem:[%s175] sm:$0xff] %vm290, %v382
      %421 = vst.msk [vmem:[%s175 + $0x8] sm:$0xff] %vm290, %v387
      %422 = vst.msk [vmem:[%s175 + $0x10] sm:$0xff] %vm290, %v392
      %423 = vst.msk [vmem:[%s175 + $0x18] sm:$0xff] %vm290, %v397
      %424 = vst.msk [vmem:[%s175 + $0x20] sm:$0xff] %vm290, %v402
      %425 = vst.msk [vmem:[%s175 + $0x28] sm:$0xff] %vm290, %v407
      %426 = vst.msk [vmem:[%s175 + $0x30] sm:$0xff] %vm290, %v412
      %427 = vst.msk [vmem:[%s175 + $0x38] sm:$0xff] %vm290, %v417
      %s428 = smul.u32 8, %s14
      %p429 = scmp.lt.s32.totalorder %s428, 15
      %s430 = scalar_select %p429, %s428, 15
      %s431 = smul.addr %s430, 8
      %s432 = scalar_lea.vmem %s3, %s431
      // Predicated region
      $region33: #{_lambda_.1} parent=31 // pred_check
        %p433 = pneg %p100
      $region34: #{_lambda_.1} parent=31 // pred_check_branch
        %435 = sbr.rel (%p433) target = $region36
      $region35: #{_lambda_.1} parent=31 // pred_region
        %s436 = smul.u32 8, %s14
      $region36: #{_lambda_.1} parent=31 // pred_fallthru
        _
    $region32: #{_lambda_.1} parent=5 // pred_fallthru
      _
    %p437 = scmp.le.s32.totalorder 2, %s9
    // Predicated region
    $region37: #{_lambda_.1} parent=5 // pred_check
      %p438 = pneg %p437
    $region38: #{_lambda_.1} parent=5 // pred_check_branch
      %440 = sbr.rel (%p438) target = $region40
    $region39: #{_lambda_.1} parent=5 // pred_region
      %s441 = ssub.s32 %s9, 2
      // Predicated region
      $region41: #{_lambda_.1} parent=39 // pred_check
        %p442 = pneg %p106
      $region42: #{_lambda_.1} parent=39 // pred_check_branch
        %444 = sbr.rel (%p442) target = $region44
      $region43: #{_lambda_.1} parent=39 // pred_region
        %s445 = smul.u32 8, %s15
        %p446 = scmp.lt.s32.totalorder %s445, 15
        %s447 = scalar_select %p446, %s445, 15
        %s448 = smul.addr %s447, 8
        %s449 = scalar_lea.vmem %s3, %s448
      $region44: #{_lambda_.1} parent=39 // pred_fallthru
        _
    $region40: #{_lambda_.1} parent=5 // pred_fallthru
      _
  $region6: #{_lambda_.1} parent=0 // loop_footer
    %s13 = sadd.s32 1, %s9
  $region7: #{_lambda_.1} parent=0 // loop_footer_branch
    %8 = sbr.rel target = $region3
  $region8: #{_lambda_.1} parent=0 // loop_exit
    _

</llo_original>
